<compile_context>
chip_gen: v7x
topology: tpu7x:2x2x1
jax: 0.10.0
libtpu: 0.0.40
codegen_flags: <defaults>
</compile_context>

<pallas_src>
import jax
import jax.numpy as jnp
from jax.experimental import pallas as pl
from jax.experimental.pallas import tpu as pltpu


# ---------------------------------------------------------------------------
# Kernels
# ---------------------------------------------------------------------------
def _concat_cls_kernel(cls_ref, x_ref, o_ref):
    # cls_ref: (1, 1, E)      -- same block for every grid step (no re-DMA)
    # x_ref  : (Bb, N, E)     -- this step's batch slab
    # o_ref  : (Bb, N+1, E)
    bb, _, e = x_ref.shape
    # Direct stores instead of concatenate: cls into row 0 only, x into rows 1..N.
    o_ref[:, 0:1, :] = jnp.broadcast_to(cls_ref[...], (bb, 1, e))
    o_ref[:, 1:, :] = x_ref[...]


def _concat_cls_pos_kernel(cls_ref, pos_ref, x_ref, o_ref):
    # Fused PositionEncoderRppg: concat cls token, then add positions, all in
    # the same VMEM-resident tile (saves a separate HBM round trip for the add).
    # pos_ref: (N+1, E) -- constant block index across the grid (DMA'd once).
    bb, _, e = x_ref.shape
    cls_row = cls_ref[...] + pos_ref[0:1, :][None, :, :]          # (1, 1, E)
    o_ref[:, 0:1, :] = jnp.broadcast_to(cls_row, (bb, 1, e))
    o_ref[:, 1:, :] = x_ref[...] + pos_ref[1:, :][None, :, :]


# ---------------------------------------------------------------------------
# Wrapper
# ---------------------------------------------------------------------------
def _pick_batch_block(B, N, E, itemsize, budget_bytes=12 << 20):
    """Largest batch block that keeps the double-buffered in+out working set
    under `budget_bytes` (safe vs. the 16 MiB default scoped VMEM on v5e and
    v7x's 64 MiB physical VMEM), divides B exactly, and leaves >=2 grid steps
    when B >= 2 so the parallel batch axis can shard across v7x's 2 TCs."""
    per_batch = (N + (N + 1)) * E * itemsize * 2  # in + out, double-buffered
    bb = int(max(1, min(B, budget_bytes // max(per_batch, 1))))
    if B >= 2:
        bb = min(bb, max(1, B // 2))
    while B % bb:
        bb -= 1
    return bb


def position_encoder_rppg(x: jax.Array, cls_token: jax.Array,
                          positions: jax.Array | None = None) -> jax.Array:
    """x: (B, N, E), cls_token: (1, 1, E), positions: optional (N+1, E).
    Returns (B, N+1, E): concat(cls, x) [+ positions if given]."""
    B, N, E = x.shape
    assert cls_token.shape == (1, 1, E), cls_token.shape
    cls_token = cls_token.astype(x.dtype)  # explicit cast, no silent promote

    bb = _pick_batch_block(B, N, E, x.dtype.itemsize)
    grid = (B // bb,)
    out_shape = jax.ShapeDtypeStruct((B, N + 1, E), x.dtype)

    cls_spec = pl.BlockSpec((1, 1, E), lambda b: (0, 0, 0))
    x_spec = pl.BlockSpec((bb, N, E), lambda b: (b, 0, 0))
    o_spec = pl.BlockSpec((bb, N + 1, E), lambda b: (b, 0, 0))

    if positions is None:
        kernel = _concat_cls_kernel
        in_specs = [cls_spec, x_spec]
        args = (cls_token, x)
    else:
        assert positions.shape == (N + 1, E), positions.shape
        positions = positions.astype(x.dtype)
        kernel = _concat_cls_pos_kernel
        pos_spec = pl.BlockSpec((N + 1, E), lambda b: (0, 0))
        in_specs = [cls_spec, pos_spec, x_spec]
        args = (cls_token, positions, x)

    return pl.pallas_call(
        kernel,
        out_shape=out_shape,
        grid_spec=pltpu.PrefetchScalarGridSpec(
            num_scalar_prefetch=0,
            grid=grid,
            in_specs=in_specs,
            out_specs=o_spec,
        ),
        compiler_params=pltpu.CompilerParams(
            dimension_semantics=("parallel",),
        ),
    )(*args)


def position_encoder_final_rppg(x: jax.Array, cls_token: jax.Array) -> jax.Array:
    """Exact PositionEncoderFinalRppg.forward (pure concat, no positions)."""
    return position_encoder_rppg(x, cls_token, positions=None)


# ---------------------------------------------------------------------------
# Pure-JAX references
# ---------------------------------------------------------------------------
def reference_final(x, cls_token):
    b = x.shape[0]
    cls_tokens = jnp.broadcast_to(cls_token, (b, 1, cls_token.shape[-1]))
    return jnp.concatenate([cls_tokens.astype(x.dtype), x], axis=1)


def reference_pos(x, cls_token, positions):
    return reference_final(x, cls_token) + positions.astype(x.dtype)[None, :, :]


if __name__ == "__main__":
    key = jax.random.PRNGKey(0)
    k_cls, k_x, k_pos = jax.random.split(key, 3)

    # Small shapes consistent with (b, n, emb_size); E = 128 keeps the output
    # lane-dense (full 128-lane vreg rows -> unmasked stores).
    B, N, E = 2, 8, 128

    cls_token = jax.random.normal(k_cls, (1, 1, E), dtype=jnp.float32)
    x = jax.random.normal(k_x, (B, N, E), dtype=jnp.float32)
    positions = jax.random.normal(k_pos, (N + 1, E), dtype=jnp.float32)

    # PositionEncoderFinalRppg (the original module): pure concat.
    out_final = jax.block_until_ready(position_encoder_final_rppg(x, cls_token))
    exp_final = reference_final(x, cls_token)
    assert out_final.shape == (B, N + 1, E), out_final.shape
    assert jnp.allclose(out_final, exp_final), "final-encoder mismatch vs reference"

    # Fused PositionEncoderRppg variant: concat + positions add.
    out_pos = jax.block_until_ready(position_encoder_rppg(x, cls_token, positions))
    exp_pos = reference_pos(x, cls_token, positions)
    assert out_pos.shape == (B, N + 1, E), out_pos.shape
    assert jnp.allclose(out_pos, exp_pos), "pos-encoder (fused) mismatch vs reference"

    print("KERNEL_OK")
</pallas_src>

<mosaic_0001>
module attributes {stable_mosaic.version = 11 : i64} {
  func.func @_concat_cls_kernel(%arg0: i32, %arg1: memref<1x1x128xf32, #tpu.memory_space<vmem>>, %arg2: memref<1x8x128xf32, #tpu.memory_space<vmem>>, %arg3: memref<1x9x128xf32, #tpu.memory_space<vmem>>) attributes {dimension_semantics = [#tpu.dimension_semantics<parallel>], iteration_bounds = array<i64: 2>, scalar_prefetch = 0 : i64, scratch_operands = 0 : i64, tpu.core_type = #tpu.core_type<tc>, window_params = [{pipeline_mode = #tpu.pipeline_mode<synchronous>, transform_indices = @transform_0, window_bounds = array<i64: 1, 1, 128>}, {transform_indices = @transform_1, window_bounds = array<i64: 1, 8, 128>}, {transform_indices = @transform_2, window_bounds = array<i64: 1, 9, 128>}]} {
    %c0 = arith.constant 0 : index
    %c0_0 = arith.constant 0 : index
    %c0_1 = arith.constant 0 : index
    %0 = vector.load %arg1[%c0, %c0_0, %c0_1] : memref<1x1x128xf32, #tpu.memory_space<vmem>>, vector<1x1x128xf32>
    %c0_2 = arith.constant 0 : index
    %c0_3 = arith.constant 0 : index
    %c0_4 = arith.constant 0 : index
    %1 = vector.load %arg3[%c0_2, %c0_3, %c0_4] : memref<1x9x128xf32, #tpu.memory_space<vmem>>, vector<1x1x128xf32>
    tpu.vector_store %arg3[%c0_2, %c0_3, %c0_4], %0 {strides = array<i32>} : memref<1x9x128xf32, #tpu.memory_space<vmem>>, vector<1x1x128xf32>,
    %c0_5 = arith.constant 0 : index
    %c0_6 = arith.constant 0 : index
    %c0_7 = arith.constant 0 : index
    %2 = vector.load %arg2[%c0_5, %c0_6, %c0_7] : memref<1x8x128xf32, #tpu.memory_space<vmem>>, vector<1x8x128xf32>
    %c0_8 = arith.constant 0 : index
    %c1 = arith.constant 1 : index
    %c0_9 = arith.constant 0 : index
    %3 = vector.load %arg3[%c0_8, %c1, %c0_9] : memref<1x9x128xf32, #tpu.memory_space<vmem>>, vector<1x8x128xf32>
    tpu.vector_store %arg3[%c0_8, %c1, %c0_9], %2 {strides = array<i32>} : memref<1x9x128xf32, #tpu.memory_space<vmem>>, vector<1x8x128xf32>,
    return
  }
  func.func @transform_0(%arg0: i32) -> (i32, i32, i32) {
    %c0_i32 = arith.constant 0 : i32
    %c0_i32_0 = arith.constant 0 : i32
    %c0_i32_1 = arith.constant 0 : i32
    %c0_i32_2 = arith.constant 0 : i32
    return %c0_i32, %c0_i32_0, %c0_i32_1 : i32, i32, i32
  }
  func.func @transform_1(%arg0: i32) -> (i32, i32, i32) {
    %c0_i32 = arith.constant 0 : i32
    %c0_i32_0 = arith.constant 0 : i32
    %c0_i32_1 = arith.constant 0 : i32
    return %arg0, %c0_i32, %c0_i32_0 : i32, i32, i32
  }
  func.func @transform_2(%arg0: i32) -> (i32, i32, i32) {
    %c0_i32 = arith.constant 0 : i32
    %c0_i32_0 = arith.constant 0 : i32
    %c0_i32_1 = arith.constant 0 : i32
    return %arg0, %c0_i32, %c0_i32_0 : i32, i32, i32
  }
}

</mosaic_0001>

<llo_original>
// kernel: tpu_custom_call.1
$region0: #{tpu_custom_call.1}
  #allocation0 [shape = 'u32[]', space=smem, size = 0x4, offset = 0x4, fixed_abs, tag = 'smem constant byte address 0x4 - core index']
  #allocation1 [shape = 'u32[144,128]{1,0:T(1,128)}', space=vmem, size = 0x12000, scoped, tag = 'internal scratch']
  %s0 = inlined_call_operand.hbm [shape: f32[1,1,128], index: 0, kind: input, shape index: {}]
  %s1 = inlined_call_operand.hbm [shape: f32[2,8,128], index: 1, kind: input, shape index: {}]
  %s2 = inlined_call_operand.vmem [shape: f32[2,9,128], index: 2, kind: output, shape index: {}]
  %s3 = sld [smem:[#allocation0]]
  $region49: #{tpu_custom_call.1} parent=0
    _
  %s5 = ssub.s32 1, %s3
  %s6 = scalar_select 0, %s5, %s3
  $region1: #{tpu_custom_call.1} parent=0
    #allocation2 [shape = 'u8[512]{0}', space=vmem, size = 0x400, scoped, tag = 'input window, operand 0, single buffered']
    #allocation3 [shape = 's32[2]{0}', space=sflag, size = 0x8, scoped, tag = 'scoped memory for tpu_custom_call.1']
    #allocation4 [shape = 'u8[8192]{0}', space=vmem, size = 0x2000, scoped, tag = 'input window, operand 1']
    #allocation5 [shape = 's32[2]{0}', space=sflag, size = 0x8, scoped, tag = 'scoped memory for tpu_custom_call.1']
    %7 = vsyncpa [#allocation3], 0
    %8 = vsyncpa [#allocation5], 0
    %s9 = scalar_lea.sflag [#allocation5], 1
    %10 = vsyncpa %s9, 0
    loop: start=0, step=1, limit=4
    $region2: #{tpu_custom_call.1} parent=1 // loop_pre_header
      _
    $region3: #{tpu_custom_call.1} parent=1 // loop_header
      %s12 = sphi 0, %s16
      %p13 = scmp.ge.s32.totalorder %s12, 4
      %s20 = sphi 0, %s20
      %s22 = sphi 0, %s20
      %s23 = sphi 0, %s22
      %s37 = sphi 0, %s23
      %s43 = sphi 0, %s45
      %s46 = sphi 0, %s43
      %s47 = sphi 0, %s46
      %s63 = sphi 0, %s47
      %s69 = sphi 0, %s71
      %s72 = sphi 0, %s69
      %s73 = sphi 0, %s72
      %s89 = sphi 0, %s73
    $region4: #{tpu_custom_call.1} parent=1 // loop_header_branch
      %15 = sbr.rel (%p13) target = $region8
    $region5: #{tpu_custom_call.1} parent=1 // loop_body
      %s17 = ssub.s32 %s12, 1
      %s18 = ssub.s32 %s12, 2
      %s19 = sadd.s32 %s12, 1
      %s21 = sadd.s32 %s20, 1
      %p24 = scmp.eq.s32.totalorder %s12, 1
      %p25 = scmp.ne.s32.totalorder %s20, %s22
      %p26 = scmp.eq.s32.totalorder %s12, 0
      %p27 = por %p25, %p26
      %p28 = scmp.ne.s32.totalorder %s20, %s22
      %p29 = scmp.eq.s32.totalorder %s17, 1
      %p30 = por %p28, %p29
      %p31 = scmp.ne.s32.totalorder %s22, %s23
      %p32 = scmp.eq.s32.totalorder %s17, 0
      %p33 = por %p31, %p32
      %p34 = scmp.ne.s32.totalorder %s22, %s23
      %p35 = scmp.eq.s32.totalorder %s18, 1
      %p36 = por %p34, %p35
      %p38 = scmp.ne.s32.totalorder %s23, %s37
      %p39 = scmp.eq.s32.totalorder %s18, 0
      %p40 = por %p38, %p39
      %s41 = ssub.s32 %s12, %s19
      %p42 = scmp.eq.s32.totalorder %s41, 0
      %s44 = sadd.s32 %s43, 1
      %s45 = scalar_select %p42, %s43, %s44
      %p48 = pneg %p42
      %p49 = scmp.eq.s32.totalorder %s12, 1
      %p50 = por %p48, %p49
      %p51 = scmp.ne.s32.totalorder %s43, %s46
      %p52 = scmp.eq.s32.totalorder %s12, 0
      %p53 = por %p51, %p52
      %p54 = scmp.ne.s32.totalorder %s43, %s46
      %p55 = scmp.eq.s32.totalorder %s17, 1
      %p56 = por %p54, %p55
      %p57 = scmp.ne.s32.totalorder %s46, %s47
      %p58 = scmp.eq.s32.totalorder %s17, 0
      %p59 = por %p57, %p58
      %p60 = scmp.ne.s32.totalorder %s46, %s47
      %p61 = scmp.eq.s32.totalorder %s18, 1
      %p62 = por %p60, %p61
      %p64 = scmp.ne.s32.totalorder %s47, %s63
      %p65 = scmp.eq.s32.totalorder %s18, 0
      %p66 = por %p64, %p65
      %s67 = ssub.s32 %s12, %s19
      %p68 = scmp.eq.s32.totalorder %s67, 0
      %s70 = sadd.s32 %s69, 1
      %s71 = scalar_select %p68, %s69, %s70
      %p74 = pneg %p68
      %p75 = scmp.eq.s32.totalorder %s12, 1
      %p76 = por %p74, %p75
      %p77 = scmp.ne.s32.totalorder %s69, %s72
      %p78 = scmp.eq.s32.totalorder %s12, 0
      %p79 = por %p77, %p78
      %p80 = scmp.ne.s32.totalorder %s69, %s72
      %p81 = scmp.eq.s32.totalorder %s17, 1
      %p82 = por %p80, %p81
      %p83 = scmp.ne.s32.totalorder %s72, %s73
      %p84 = scmp.eq.s32.totalorder %s17, 0
      %p85 = por %p83, %p84
      %p86 = scmp.ne.s32.totalorder %s72, %s73
      %p87 = scmp.eq.s32.totalorder %s18, 1
      %p88 = por %p86, %p87
      %p90 = scmp.ne.s32.totalorder %s73, %s89
      %p91 = scmp.eq.s32.totalorder %s18, 0
      %p92 = por %p90, %p91
      %p93 = scmp.le.s32.totalorder 1, %s12
      %p94 = scmp.lt.s32.totalorder %s12, 3
      %p95 = pnand %p93, %p94
      %p96 = pneg %p95
      // Predicated region
      $region9: #{tpu_custom_call.1} parent=5 // pred_check
        _
      $region10: #{tpu_custom_call.1} parent=5 // pred_check_branch
        %98 = sbr.rel (%p95) target = $region12
      $region11: #{tpu_custom_call.1} parent=5 // pred_region
        %s99 = ssub.s32 %s12, 1
        // Predicated region
        $region13: #{tpu_custom_call.1} parent=11 // pred_check
          %p100 = pneg %p33
        $region14: #{tpu_custom_call.1} parent=11 // pred_check_branch
          %102 = sbr.rel (%p100) target = $region16
        $region15: #{tpu_custom_call.1} parent=11 // pred_region
          %s104 = ssub.s32 16, 16
          %105 = vsyncadd [#allocation3], %s104
          %s107 = sshll.u32 [#allocation2], 4
          %s108 = int_to_ptr.vmem [resolvable:$true] %s107
          %110 = dma.hbm_to_vmem [thread:$0]  %s0, 16, %s108, [#allocation3]
        $region16: #{tpu_custom_call.1} parent=11 // pred_fallthru
          _
      $region12: #{tpu_custom_call.1} parent=5 // pred_fallthru
        _
      %p111 = scmp.lt.s32.totalorder %s12, 2
      // Predicated region
      $region17: #{tpu_custom_call.1} parent=5 // pred_check
        %p112 = pneg %p111
      $region18: #{tpu_custom_call.1} parent=5 // pred_check_branch
        %114 = sbr.rel (%p112) target = $region20
      $region19: #{tpu_custom_call.1} parent=5 // pred_region
        // Predicated region
        $region21: #{tpu_custom_call.1} parent=19 // pred_check
          %p115 = pneg %p53
        $region22: #{tpu_custom_call.1} parent=19 // pred_check_branch
          %117 = sbr.rel (%p115) target = $region24
        $region23: #{tpu_custom_call.1} parent=19 // pred_region
          %s118 = sand.u32 %s43, 1
          %s119 = scalar_lea.sflag [#allocation5], %s118
          %s120 = sand.u32 %s43, 1
          %s121 = smul.addr %s120, 8
          %s122 = scalar_lea.vmem [#allocation4], %s121
          %s124 = ssub.s32 128, 128
          %125 = vsyncadd %s119, %s124
          %s126 = smul.addr %s12, 128
          %s127 = scalar_lea.hbm %s1, %s126
          %s129 = sshll.u32 %s122, 4
          %s130 = int_to_ptr.vmem [resolvable:$true] %s129
          %132 = dma.hbm_to_vmem [thread:$0]  %s127, 128, %s130, %s119
        $region24: #{tpu_custom_call.1} parent=19 // pred_fallthru
          _
      $region20: #{tpu_custom_call.1} parent=5 // pred_fallthru
        _
      %p133 = scmp.le.s32.totalorder 1, %s12
      %p134 = scmp.lt.s32.totalorder %s12, 3
      %p135 = pnand %p133, %p134
      %p136 = pneg %p135
      // Predicated region
      $region25: #{tpu_custom_call.1} parent=5 // pred_check
        _
      $region26: #{tpu_custom_call.1} parent=5 // pred_check_branch
        %138 = sbr.rel (%p135) target = $region28
      $region27: #{tpu_custom_call.1} parent=5 // pred_region
        %s139 = ssub.s32 %s12, 1
        // Predicated region
        $region29: #{tpu_custom_call.1} parent=27 // pred_check
          %p140 = pneg %p33
        $region30: #{tpu_custom_call.1} parent=27 // pred_check_branch
          %142 = sbr.rel (%p140) target = $region32
        $region31: #{tpu_custom_call.1} parent=27 // pred_region
          %143 = dma.done [#allocation3], 16
        $region32: #{tpu_custom_call.1} parent=27 // pred_fallthru
          _
        %s144 = sand.u32 %s46, 1
        %s145 = scalar_lea.sflag [#allocation5], %s144
        %s146 = sand.u32 %s46, 1
        %s147 = smul.addr %s146, 8
        %s148 = scalar_lea.vmem [#allocation4], %s147
        // Predicated region
        $region33: #{tpu_custom_call.1} parent=27 // pred_check
          %p149 = pneg %p59
        $region34: #{tpu_custom_call.1} parent=27 // pred_check_branch
          %151 = sbr.rel (%p149) target = $region36
        $region35: #{tpu_custom_call.1} parent=27 // pred_region
          %152 = dma.done %s145, 128
        $region36: #{tpu_custom_call.1} parent=27 // pred_fallthru
          _
        %p153 = pneg %p33
        %p154 = pneg %p30
        %s155 = sand.u32 %s46, 1
        %s156 = scalar_lea.sflag [#allocation5], %s155
        %s157 = sand.u32 %s46, 1
        %s158 = smul.addr %s157, 8
        %s159 = scalar_lea.vmem [#allocation4], %s158
        %p160 = pneg %p59
        %p161 = pneg %p56
        %p162 = pneg %p85
        %p163 = pneg %p82
        %p164 = scmp.lt.s32.totalorder %s17, 1
        %s165 = scalar_select %p164, %s17, 1
        %s166 = smul.addr %s165, 2
        %s167 = smul.addr %s166, 8
        %s168 = scalar_lea.vmem %s2, %s167
        %p169 = scmp.lt.s32.totalorder %s17, 1
        %s170 = scalar_select %p169, %s17, 1
        %s171 = smul.addr %s170, 2
        %s172 = smul.addr %s171, 8
        %s173 = scalar_lea.vmem %s2, %s172
        %v174 = vld [vmem:[#allocation2] sm:$0x1]
        %175 = vst [vmem:[%s173] sm:$0x1] %v174
        %v176 = vld [vmem:[%s148] sm:$0xff]
        %177 = vst [vmem:[%s173 + $0x1] sm:$0xff] %v176
        %p178 = scmp.lt.s32.totalorder %s17, 1
        %s179 = scalar_select %p178, %s17, 1
        %s180 = smul.addr %s179, 2
        %s181 = smul.addr %s180, 8
        %s182 = scalar_lea.vmem %s2, %s181
        // Predicated region
        $region37: #{tpu_custom_call.1} parent=27 // pred_check
          %p183 = pneg %p82
        $region38: #{tpu_custom_call.1} parent=27 // pred_check_branch
          %185 = sbr.rel (%p183) target = $region40
        $region39: #{tpu_custom_call.1} parent=27 // pred_region
          _
        $region40: #{tpu_custom_call.1} parent=27 // pred_fallthru
          _
      $region28: #{tpu_custom_call.1} parent=5 // pred_fallthru
        _
      %p186 = scmp.le.s32.totalorder 2, %s12
      // Predicated region
      $region41: #{tpu_custom_call.1} parent=5 // pred_check
        %p187 = pneg %p186
      $region42: #{tpu_custom_call.1} parent=5 // pred_check_branch
        %189 = sbr.rel (%p187) target = $region44
      $region43: #{tpu_custom_call.1} parent=5 // pred_region
        %s190 = ssub.s32 %s12, 2
        // Predicated region
        $region45: #{tpu_custom_call.1} parent=43 // pred_check
          %p191 = pneg %p88
        $region46: #{tpu_custom_call.1} parent=43 // pred_check_branch
          %193 = sbr.rel (%p191) target = $region48
        $region47: #{tpu_custom_call.1} parent=43 // pred_region
          %p194 = scmp.lt.s32.totalorder %s18, 1
          %s195 = scalar_select %p194, %s18, 1
          %s196 = smul.addr %s195, 2
          %s197 = smul.addr %s196, 8
          %s198 = scalar_lea.vmem %s2, %s197
        $region48: #{tpu_custom_call.1} parent=43 // pred_fallthru
          _
      $region44: #{tpu_custom_call.1} parent=5 // pred_fallthru
        _
    $region6: #{tpu_custom_call.1} parent=1 // loop_footer
      %s16 = sadd.s32 1, %s12
    $region7: #{tpu_custom_call.1} parent=1 // loop_footer_branch
      %11 = sbr.rel target = $region3
    $region8: #{tpu_custom_call.1} parent=1 // loop_exit
      _
    %199 = vsyncpa [#allocation3], 1
    %s200 = scalar_lea.sflag [#allocation3], 1
    %201 = vsyncpa %s200, 1
    %202 = vsyncpa [#allocation5], 1
    %s203 = scalar_lea.sflag [#allocation5], 1
    %204 = vsyncpa %s203, 1

</llo_original>
